<compile_context>
chip_gen: v5e
topology: v5e:2x2
jax: 0.10.0
libtpu: 0.0.40
codegen_flags: <defaults>
</compile_context>

<pallas_src>
import jax
import jax.numpy as jnp
from jax.experimental import pallas as pl
from jax.experimental.pallas import tpu as pltpu


def _round_up(x, m):
    return ((x + m - 1) // m) * m


def _cdiv(a, b):
    return -(-a // b)


def _pick_tn(d_voc, tn_target):
    """Largest 128-multiple <= tn_target that divides d_voc (else full vocab)."""
    if d_voc <= tn_target:
        return d_voc
    tn = (tn_target // 128) * 128
    while tn >= 128:
        if d_voc % tn == 0:
            return tn
        tn -= 128
    # TODO(synk): pad the vocab axis (bias = -inf on pad lanes) so awkward
    # d_voc can still be tiled; for now fall back to a single full-vocab tile.
    return d_voc


def _classifier_kernel(x_ref, w_ref, b_ref, out_ref, m_ref, l_ref):
    """Two-pass fused linear + log-softmax over one (row tile, vocab tile).

    grid = (row_tiles, 2, vocab_tiles)
      x_ref:   [tile_m, d_in]  bf16  (resident across pass/vocab axes)
      w_ref:   [d_in, tn]      bf16  (streamed along vocab axis)
      b_ref:   [1, tn]         f32
      out_ref: [tile_m, tn]    out dtype
      m_ref:   [tile_m, 1]     f32 running max        (scratch)
      l_ref:   [tile_m, 1]     f32 running sum of exp (scratch)
    """
    p = pl.program_id(1)   # 0 = accumulate logsumexp stats, 1 = write output
    j = pl.program_id(2)   # vocab tile

    # MXU: bf16 x bf16 -> f32 accumulation; bias added in f32.
    logits = jnp.dot(x_ref[...], w_ref[...], preferred_element_type=jnp.float32)
    logits = logits + b_ref[...]

    @pl.when(p == 0)
    def _accumulate_stats():
        @pl.when(j == 0)
        def _init():
            m_ref[...] = jnp.full_like(m_ref, -jnp.inf)
            l_ref[...] = jnp.zeros_like(l_ref)

        m_old = m_ref[...]
        m_new = jnp.maximum(m_old, jnp.max(logits, axis=-1, keepdims=True))
        # Rescale of the running sum is done in f32 (correctness requirement).
        l_ref[...] = l_ref[...] * jnp.exp(m_old - m_new) + jnp.sum(
            jnp.exp(logits - m_new), axis=-1, keepdims=True)
        m_ref[...] = m_new

    @pl.when(p == 1)
    def _write_output():
        lse = m_ref[...] + jnp.log(l_ref[...])
        out_ref[...] = (logits - lse).astype(out_ref.dtype)


def classifier_forward(x, params, *, tm=512, tn=512, out_dtype=jnp.bfloat16):
    """Pallas equivalent of Classifier.forward.

    Args:
        x:      [B, S, d_in] (3-D, as asserted by the PyTorch module)
        params: dict with 'w_t' [d_in, d_voc] and 'b' [d_voc]
    Returns:
        out:    [B, S, d_voc] log-probabilities (out_dtype)
    """
    assert x.ndim == 3, "Classifier expects a 3-D input"
    B, S, d_in = x.shape
    w_t = params["w_t"].astype(jnp.bfloat16)          # bf16 operands for the MXU
    b = params["b"].astype(jnp.float32).reshape(1, -1)
    d_voc = w_t.shape[1]

    # --- row tiling: size tiles from the actual M to avoid gross over-padding
    M = B * S
    n_row = max(1, _cdiv(M, tm))
    tile_m = _round_up(_cdiv(M, n_row), 16)            # 16-sublane aligned (bf16)
    Mp = n_row * tile_m

    x2 = x.reshape(M, d_in).astype(jnp.bfloat16)
    if Mp != M:
        x2 = jnp.pad(x2, ((0, Mp - M), (0, 0)))

    # --- vocab tiling (multiple of 128; prefer 256-multiples for v6e/v7x MXU)
    tile_n = _pick_tn(d_voc, tn)
    n_voc = d_voc // tile_n

    # --- explicit VMEM budget from actual tile sizes (default scoped limits
    #     are 16/32 MiB; v7x physical VMEM is 64 MiB).
    out_itemsize = jnp.dtype(out_dtype).itemsize
    x_bytes = tile_m * d_in * 2
    w_bytes = d_in * tile_n * 2
    b_bytes = tile_n * 4
    o_bytes = tile_m * tile_n * out_itemsize
    scratch_bytes = 2 * tile_m * 128 * 4               # lane-padded [tile_m, 1] f32
    needed = 2 * (x_bytes + w_bytes + b_bytes + o_bytes) + scratch_bytes
    vmem_limit = min(max(int(needed * 1.5) + (2 << 20), 8 << 20), 64 << 20)

    cost = pl.CostEstimate(
        flops=2 * 2 * Mp * d_in * d_voc,                      # two vocab sweeps
        transcendentals=Mp * d_voc,                           # exp in pass 0
        bytes_accessed=(Mp * d_in * 2                         # x (bf16)
                        + 2 * n_row * d_in * d_voc * 2        # W streamed 2x/row tile
                        + Mp * d_voc * out_itemsize),         # output written once
    )

    out = pl.pallas_call(
        _classifier_kernel,
        out_shape=jax.ShapeDtypeStruct((Mp, d_voc), out_dtype),
        grid=(n_row, 2, n_voc),
        in_specs=[
            # x row tile: resident across the pass/vocab axes
            pl.BlockSpec((tile_m, d_in), lambda i, p, j: (i, 0)),
            # weights / bias: streamed along the vocab axis
            pl.BlockSpec((d_in, tile_n), lambda i, p, j: (0, j)),
            pl.BlockSpec((1, tile_n), lambda i, p, j: (0, j)),
        ],
        # During pass 0 (p == 0) the output block index is pinned to (i, 0) and
        # the kernel never writes it, so nothing is flushed; pass 1 visits each
        # (i, j) block exactly once and writes the final log-probs.
        out_specs=pl.BlockSpec((tile_m, tile_n), lambda i, p, j: (i, j * p)),
        scratch_shapes=[
            pltpu.VMEM((tile_m, 1), jnp.float32),   # running max m
            pltpu.VMEM((tile_m, 1), jnp.float32),   # running sum-of-exp l
        ],
        compiler_params=pltpu.CompilerParams(
            dimension_semantics=("parallel", "arbitrary", "arbitrary"),
            vmem_limit_bytes=vmem_limit,
        ),
        cost_estimate=cost,
    )(x2, w_t, b)

    return out[:M].reshape(B, S, d_voc)


def init_classifier_params(key, d_in, d_voc):
    """Deterministic Linear init (same fan-in scaling as nn.Linear default)."""
    k1, k2 = jax.random.split(key, 2)
    scale = 1.0 / jnp.sqrt(d_in)
    # Stored pre-transposed for [M, d_in] @ [d_in, d_voc] matmuls in the kernel.
    w_t = jax.random.uniform(k1, (d_in, d_voc), jnp.float32, -scale, scale)
    b = jax.random.uniform(k2, (d_voc,), jnp.float32, -scale, scale)
    return {"w_t": w_t, "b": b}


def _reference_forward(x, params):
    """Pure-JAX reference (same bf16 operand rounding, f32 math)."""
    xb = x.astype(jnp.bfloat16).astype(jnp.float32)
    wb = params["w_t"].astype(jnp.bfloat16).astype(jnp.float32)
    logits = xb @ wb + params["b"].astype(jnp.float32)
    return jax.nn.log_softmax(logits, axis=-1)


def _check(out, ref, B, S, d_voc):
    assert out.ndim == 3
    assert out.shape == (B, S, d_voc)
    out_f32 = out.astype(jnp.float32)
    assert jnp.all(jnp.isfinite(out_f32))
    # bf16 output -> generous but meaningful tolerances
    assert jnp.allclose(out_f32, ref, atol=5e-2, rtol=2e-2)
    # rows of a log-softmax must sum (in prob space) to ~1
    assert jnp.allclose(jnp.sum(jnp.exp(out_f32), axis=-1), 1.0, atol=3e-2)


if __name__ == "__main__":
    key = jax.random.PRNGKey(0)

    # Case 1: lane-aligned vocab, multiple vocab tiles (tn=128 -> 2 tiles).
    batch, seq, d_in, d_voc = 2, 8, 32, 256
    k_x, k_p, key = jax.random.split(key, 3)
    x = jax.random.normal(k_x, (batch, seq, d_in), jnp.float32)
    params = init_classifier_params(k_p, d_in, d_voc)
    out = jax.block_until_ready(classifier_forward(x, params, tn=128))
    _check(out, _reference_forward(x, params), batch, seq, d_voc)

    # Case 2: awkward M (row padding) + 3 vocab tiles.
    batch2, seq2, d_in2, d_voc2 = 3, 5, 64, 384
    k_x2, k_p2, key = jax.random.split(key, 3)
    x2 = jax.random.normal(k_x2, (batch2, seq2, d_in2), jnp.float32)
    params2 = init_classifier_params(k_p2, d_in2, d_voc2)
    out2 = jax.block_until_ready(classifier_forward(x2, params2, tn=128))
    _check(out2, _reference_forward(x2, params2), batch2, seq2, d_voc2)

    print("KERNEL_OK")
</pallas_src>

<mosaic_0001>
module attributes {stable_mosaic.version = 11 : i64} {
  func.func @_classifier_kernel(%arg0: i32, %arg1: i32, %arg2: i32, %arg3: memref<16x32xbf16, #tpu.memory_space<vmem>>, %arg4: memref<32x128xbf16, #tpu.memory_space<vmem>>, %arg5: memref<1x128xf32, #tpu.memory_space<vmem>>, %arg6: memref<16x128xbf16, #tpu.memory_space<vmem>>, %arg7: memref<16x1xf32, #tpu.memory_space<vmem>>, %arg8: memref<16x1xf32, #tpu.memory_space<vmem>>) attributes {dimension_semantics = [#tpu.dimension_semantics<parallel>, #tpu.dimension_semantics<arbitrary>, #tpu.dimension_semantics<arbitrary>], iteration_bounds = array<i64: 1, 2, 2>, scalar_prefetch = 0 : i64, scratch_operands = 2 : i64, tpu.core_type = #tpu.core_type<tc>, window_params = [{transform_indices = @transform_0, window_bounds = array<i64: 16, 32>}, {transform_indices = @transform_1, window_bounds = array<i64: 32, 128>}, {transform_indices = @transform_2, window_bounds = array<i64: 1, 128>}, {transform_indices = @transform_3, window_bounds = array<i64: 16, 128>}]} {
    %c0 = arith.constant 0 : index
    %c0_0 = arith.constant 0 : index
    %0 = vector.load %arg3[%c0, %c0_0] : memref<16x32xbf16, #tpu.memory_space<vmem>>, vector<16x32xbf16>
    %c0_1 = arith.constant 0 : index
    %c0_2 = arith.constant 0 : index
    %1 = vector.load %arg4[%c0_1, %c0_2] : memref<32x128xbf16, #tpu.memory_space<vmem>>, vector<32x128xbf16>
    %cst = arith.constant dense<0.000000e+00> : vector<16x128xf32>
    %2 = tpu.matmul %0, %1, %cst {dimension_numbers = #tpu.dot_dimension_numbers<[1], [0], [0], [1], [0, 0, 1, 1], [], []>} : vector<16x32xbf16>, vector<32x128xbf16>, vector<16x128xf32> -> vector<16x128xf32>
    %c0_3 = arith.constant 0 : index
    %c0_4 = arith.constant 0 : index
    %3 = vector.load %arg5[%c0_3, %c0_4] : memref<1x128xf32, #tpu.memory_space<vmem>>, vector<1x128xf32>
    %4 = vector.broadcast %3 : vector<1x128xf32> to vector<16x128xf32>
    %5 = arith.addf %2, %4 : vector<16x128xf32>
    %c0_i32 = arith.constant 0 : i32
    %6 = arith.cmpi eq, %arg1, %c0_i32 : i32
    %7 = arith.extui %6 : i1 to i32
    %c0_i32_5 = arith.constant 0 : i32
    %8 = arith.cmpi ne, %7, %c0_i32_5 : i32
    scf.if %8 {
      %c0_i32_7 = arith.constant 0 : i32
      %12 = arith.cmpi eq, %arg2, %c0_i32_7 : i32
      %13 = arith.extui %12 : i1 to i32
      %c0_i32_8 = arith.constant 0 : i32
      %14 = arith.cmpi ne, %13, %c0_i32_8 : i32
      scf.if %14 {
        %cst_19 = arith.constant 0xFF800000 : f32
        %31 = vector.broadcast %cst_19 : f32 to vector<16x1xf32>
        %c0_20 = arith.constant 0 : index
        %c0_21 = arith.constant 0 : index
        %32 = vector.load %arg7[%c0_20, %c0_21] : memref<16x1xf32, #tpu.memory_space<vmem>>, vector<16x1xf32>
        tpu.vector_store %arg7[%c0_20, %c0_21], %31 {strides = array<i32>} : memref<16x1xf32, #tpu.memory_space<vmem>>, vector<16x1xf32>,
        %cst_22 = arith.constant 0.000000e+00 : f32
        %33 = vector.broadcast %cst_22 : f32 to vector<16x1xf32>
        %c0_23 = arith.constant 0 : index
        %c0_24 = arith.constant 0 : index
        %34 = vector.load %arg8[%c0_23, %c0_24] : memref<16x1xf32, #tpu.memory_space<vmem>>, vector<16x1xf32>
        tpu.vector_store %arg8[%c0_23, %c0_24], %33 {strides = array<i32>} : memref<16x1xf32, #tpu.memory_space<vmem>>, vector<16x1xf32>,
      } else {
      }
      %c0_9 = arith.constant 0 : index
      %c0_10 = arith.constant 0 : index
      %15 = vector.load %arg7[%c0_9, %c0_10] : memref<16x1xf32, #tpu.memory_space<vmem>>, vector<16x1xf32>
      %cst_11 = arith.constant dense<0xFF800000> : vector<16xf32>
      %16 = vector.multi_reduction <maximumf>, %5, %cst_11 [1] : vector<16x128xf32> to vector<16xf32>
      %17 = vector.shape_cast %16 : vector<16xf32> to vector<16x1xf32>
      %18 = arith.maximumf %15, %17 : vector<16x1xf32>
      %c0_12 = arith.constant 0 : index
      %c0_13 = arith.constant 0 : index
      %19 = vector.load %arg8[%c0_12, %c0_13] : memref<16x1xf32, #tpu.memory_space<vmem>>, vector<16x1xf32>
      %20 = arith.subf %15, %18 : vector<16x1xf32>
      %21 = math.exp %20 : vector<16x1xf32>
      %22 = arith.mulf %19, %21 : vector<16x1xf32>
      %23 = vector.broadcast %18 : vector<16x1xf32> to vector<16x128xf32>
      %24 = arith.subf %5, %23 : vector<16x128xf32>
      %25 = math.exp %24 : vector<16x128xf32>
      %cst_14 = arith.constant dense<0.000000e+00> : vector<16xf32>
      %26 = vector.multi_reduction <add>, %25, %cst_14 [1] : vector<16x128xf32> to vector<16xf32>
      %27 = vector.shape_cast %26 : vector<16xf32> to vector<16x1xf32>
      %28 = arith.addf %22, %27 : vector<16x1xf32>
      %c0_15 = arith.constant 0 : index
      %c0_16 = arith.constant 0 : index
      %29 = vector.load %arg8[%c0_15, %c0_16] : memref<16x1xf32, #tpu.memory_space<vmem>>, vector<16x1xf32>
      tpu.vector_store %arg8[%c0_15, %c0_16], %28 {strides = array<i32>} : memref<16x1xf32, #tpu.memory_space<vmem>>, vector<16x1xf32>,
      %c0_17 = arith.constant 0 : index
      %c0_18 = arith.constant 0 : index
      %30 = vector.load %arg7[%c0_17, %c0_18] : memref<16x1xf32, #tpu.memory_space<vmem>>, vector<16x1xf32>
      tpu.vector_store %arg7[%c0_17, %c0_18], %18 {strides = array<i32>} : memref<16x1xf32, #tpu.memory_space<vmem>>, vector<16x1xf32>,
    } else {
    }
    %c1_i32 = arith.constant 1 : i32
    %9 = arith.cmpi eq, %arg1, %c1_i32 : i32
    %10 = arith.extui %9 : i1 to i32
    %c0_i32_6 = arith.constant 0 : i32
    %11 = arith.cmpi ne, %10, %c0_i32_6 : i32
    scf.if %11 {
      %c0_7 = arith.constant 0 : index
      %c0_8 = arith.constant 0 : index
      %12 = vector.load %arg7[%c0_7, %c0_8] : memref<16x1xf32, #tpu.memory_space<vmem>>, vector<16x1xf32>
      %c0_9 = arith.constant 0 : index
      %c0_10 = arith.constant 0 : index
      %13 = vector.load %arg8[%c0_9, %c0_10] : memref<16x1xf32, #tpu.memory_space<vmem>>, vector<16x1xf32>
      %14 = math.log %13 : vector<16x1xf32>
      %15 = arith.addf %12, %14 : vector<16x1xf32>
      %16 = vector.broadcast %15 : vector<16x1xf32> to vector<16x128xf32>
      %17 = arith.subf %5, %16 : vector<16x128xf32>
      %18 = arith.truncf %17 : vector<16x128xf32> to vector<16x128xbf16>
      %c0_11 = arith.constant 0 : index
      %c0_12 = arith.constant 0 : index
      %19 = vector.load %arg6[%c0_11, %c0_12] : memref<16x128xbf16, #tpu.memory_space<vmem>>, vector<16x128xbf16>
      tpu.vector_store %arg6[%c0_11, %c0_12], %18 {strides = array<i32>} : memref<16x128xbf16, #tpu.memory_space<vmem>>, vector<16x128xbf16>,
    } else {
    }
    return
  }
  func.func @transform_0(%arg0: i32, %arg1: i32, %arg2: i32) -> (i32, i32) {
    %c0_i32 = arith.constant 0 : i32
    %c0_i32_0 = arith.constant 0 : i32
    return %arg0, %c0_i32 : i32, i32
  }
  func.func @transform_1(%arg0: i32, %arg1: i32, %arg2: i32) -> (i32, i32) {
    %c0_i32 = arith.constant 0 : i32
    %c0_i32_0 = arith.constant 0 : i32
    return %c0_i32, %arg2 : i32, i32
  }
  func.func @transform_2(%arg0: i32, %arg1: i32, %arg2: i32) -> (i32, i32) {
    %c0_i32 = arith.constant 0 : i32
    %c0_i32_0 = arith.constant 0 : i32
    return %c0_i32, %arg2 : i32, i32
  }
  func.func @transform_3(%arg0: i32, %arg1: i32, %arg2: i32) -> (i32, i32) {
    %0 = arith.muli %arg2, %arg1 : i32
    %c0_i32 = arith.constant 0 : i32
    return %arg0, %0 : i32, i32
  }
}

</mosaic_0001>

<llo_original>
// kernel: tpu_custom_call.1
$region0: #{tpu_custom_call.1}
  #allocation0 [shape = 'u32[]', space=smem, size = 0x4, offset = 0x4, fixed_abs, tag = 'smem constant byte address 0x4 - core index']
  #allocation1 [shape = 'u32[72,128]{1,0:T(1,128)}', space=vmem, size = 0x9000, scoped, tag = 'internal scratch']
  #allocation2 [shape = 'f32[16,1]{1,0:T(8,128)}', space=vmem, size = 0x2000, scoped, tag = 'scratch operand']
  #allocation3 [shape = 'f32[16,1]{1,0:T(8,128)}', space=vmem, size = 0x2000, scoped, tag = 'scratch operand']
  %s0 = inlined_call_operand.hbm [shape: bf16[16,32], index: 0, kind: input, shape index: {}]
  %s1 = inlined_call_operand.hbm [shape: bf16[32,256], index: 1, kind: input, shape index: {}]
  %s2 = inlined_call_operand.hbm [shape: f32[1,256], index: 2, kind: input, shape index: {}]
  %s3 = inlined_call_operand.hbm [shape: bf16[16,256], index: 3, kind: output, shape index: {}]
  %s4 = sld [smem:[#allocation0]]
  $region69: #{tpu_custom_call.1} parent=0
    _
  %s6 = ssub.s32 1, %s4
  %s7 = scalar_select 0, %s6, %s4
  $region1: #{tpu_custom_call.1} parent=0
    #allocation4 [shape = 'u8[4096]{0}', space=vmem, size = 0x1000, scoped, tag = 'input window, operand 0, single buffered']
    #allocation5 [shape = 's32[2]{0}', space=sflag, size = 0x8, scoped, tag = 'scoped memory for tpu_custom_call.1']
    #allocation6 [shape = 's32[2]{0}', space=sflag, size = 0x8, scoped, tag = 'scoped memory for tpu_custom_call.1']
    #allocation7 [shape = 'u8[16384]{0}', space=vmem, size = 0x4000, scoped, tag = 'input window, operand 1']
    #allocation8 [shape = 's32[2]{0}', space=sflag, size = 0x8, scoped, tag = 'scoped memory for tpu_custom_call.1']
    #allocation9 [shape = 'u8[1024]{0}', space=vmem, size = 0x400, scoped, tag = 'input window, operand 2']
    #allocation10 [shape = 'u8[8192]{0}', space=vmem, size = 0x2000, scoped, tag = 'output window, operand 0']
    %8 = vsyncpa [#allocation5], 0
    %9 = vsyncpa [#allocation8], 0
    %s10 = scalar_lea.sflag [#allocation8], 1
    %11 = vsyncpa %s10, 0
    %12 = vsyncpa [#allocation6], 0
    %s13 = scalar_lea.sflag [#allocation6], 1
    %14 = vsyncpa %s13, 0
    loop: start=0, step=1, limit=6
    $region2: #{tpu_custom_call.1} parent=1 // loop_pre_header
      _
    $region3: #{tpu_custom_call.1} parent=1 // loop_header
      %s16 = sphi 0, %s20
      %p17 = scmp.ge.s32.totalorder %s16, 6
      %s23 = sphi 0, %s42
      %s24 = sphi 0, %s38
      %s25 = sphi 0, %s34
      %s26 = sphi 0, %s23
      %s27 = sphi 0, %s24
      %s28 = sphi 0, %s25
      %s29 = sphi 0, %s26
      %s30 = sphi 0, %s27
      %s31 = sphi 0, %s28
      %s45 = sphi 0, %s47
      %s48 = sphi 0, %s45
      %s49 = sphi 0, %s48
      %s65 = sphi 0, %s49
      %s71 = sphi 0, %s73
      %s74 = sphi 0, %s71
      %s75 = sphi 0, %s74
      %s91 = sphi 0, %s75
      %s97 = sphi 0, %s99
      %s100 = sphi 0, %s97
      %s101 = sphi 0, %s100
      %s117 = sphi 0, %s101
      %s127 = sphi 0, %s129
      %s130 = sphi 0, %s127
      %s131 = sphi 0, %s130
      %s147 = sphi 0, %s131
    $region4: #{tpu_custom_call.1} parent=1 // loop_header_branch
      %19 = sbr.rel (%p17) target = $region8
    $region5: #{tpu_custom_call.1} parent=1 // loop_body
      %s21 = ssub.s32 %s16, 1
      %s22 = ssub.s32 %s16, 2
      %s32 = sadd.s32 1, %s25
      %p33 = scmp.ge.s32.totalorder %s32, 2
      %s34 = scalar_select %p33, 0, %s32
      %s35 = sadd.s32 1, %s24
      %s36 = scalar_select %p33, %s35, %s24
      %p37 = scmp.ge.s32.totalorder %s36, 2
      %s38 = scalar_select %p37, 0, %s36
      %s39 = sadd.s32 1, %s23
      %s40 = scalar_select %p37, %s39, %s23
      %p41 = scmp.ge.s32.totalorder %s40, 1
      %s42 = scalar_select %p41, 0, %s40
      %s43 = ssub.s32 %s23, %s42
      %p44 = scmp.eq.s32.totalorder %s43, 0
      %s46 = sadd.s32 %s45, 1
      %s47 = scalar_select %p44, %s45, %s46
      %p50 = pneg %p44
      %p51 = scmp.eq.s32.totalorder %s16, 3
      %p52 = por %p50, %p51
      %p53 = scmp.ne.s32.totalorder %s45, %s48
      %p54 = scmp.eq.s32.totalorder %s16, 0
      %p55 = por %p53, %p54
      %p56 = scmp.ne.s32.totalorder %s45, %s48
      %p57 = scmp.eq.s32.totalorder %s21, 3
      %p58 = por %p56, %p57
      %p59 = scmp.ne.s32.totalorder %s48, %s49
      %p60 = scmp.eq.s32.totalorder %s21, 0
      %p61 = por %p59, %p60
      %p62 = scmp.ne.s32.totalorder %s48, %s49
      %p63 = scmp.eq.s32.totalorder %s22, 3
      %p64 = por %p62, %p63
      %p66 = scmp.ne.s32.totalorder %s49, %s65
      %p67 = scmp.eq.s32.totalorder %s22, 0
      %p68 = por %p66, %p67
      %s69 = ssub.s32 %s25, %s34
      %p70 = scmp.eq.s32.totalorder %s69, 0
      %s72 = sadd.s32 %s71, 1
      %s73 = scalar_select %p70, %s71, %s72
      %p76 = pneg %p70
      %p77 = scmp.eq.s32.totalorder %s16, 3
      %p78 = por %p76, %p77
      %p79 = scmp.ne.s32.totalorder %s71, %s74
      %p80 = scmp.eq.s32.totalorder %s16, 0
      %p81 = por %p79, %p80
      %p82 = scmp.ne.s32.totalorder %s71, %s74
      %p83 = scmp.eq.s32.totalorder %s21, 3
      %p84 = por %p82, %p83
      %p85 = scmp.ne.s32.totalorder %s74, %s75
      %p86 = scmp.eq.s32.totalorder %s21, 0
      %p87 = por %p85, %p86
      %p88 = scmp.ne.s32.totalorder %s74, %s75
      %p89 = scmp.eq.s32.totalorder %s22, 3
      %p90 = por %p88, %p89
      %p92 = scmp.ne.s32.totalorder %s75, %s91
      %p93 = scmp.eq.s32.totalorder %s22, 0
      %p94 = por %p92, %p93
      %s95 = ssub.s32 %s25, %s34
      %p96 = scmp.eq.s32.totalorder %s95, 0
      %s98 = sadd.s32 %s97, 1
      %s99 = scalar_select %p96, %s97, %s98
      %p102 = pneg %p96
      %p103 = scmp.eq.s32.totalorder %s16, 3
      %p104 = por %p102, %p103
      %p105 = scmp.ne.s32.totalorder %s97, %s100
      %p106 = scmp.eq.s32.totalorder %s16, 0
      %p107 = por %p105, %p106
      %p108 = scmp.ne.s32.totalorder %s97, %s100
      %p109 = scmp.eq.s32.totalorder %s21, 3
      %p110 = por %p108, %p109
      %p111 = scmp.ne.s32.totalorder %s100, %s101
      %p112 = scmp.eq.s32.totalorder %s21, 0
      %p113 = por %p111, %p112
      %p114 = scmp.ne.s32.totalorder %s100, %s101
      %p115 = scmp.eq.s32.totalorder %s22, 3
      %p116 = por %p114, %p115
      %p118 = scmp.ne.s32.totalorder %s101, %s117
      %p119 = scmp.eq.s32.totalorder %s22, 0
      %p120 = por %p118, %p119
      %s121 = smul.u32 %s25, %s24
      %s122 = smul.u32 %s34, %s38
      %s123 = ssub.s32 %s23, %s42
      %s124 = ssub.s32 %s121, %s122
      %s125 = sor.u32 %s123, %s124
      %p126 = scmp.eq.s32.totalorder %s125, 0
      %s128 = sadd.s32 %s127, 1
      %s129 = scalar_select %p126, %s127, %s128
      %p132 = pneg %p126
      %p133 = scmp.eq.s32.totalorder %s16, 3
      %p134 = por %p132, %p133
      %p135 = scmp.ne.s32.totalorder %s127, %s130
      %p136 = scmp.eq.s32.totalorder %s16, 0
      %p137 = por %p135, %p136
      %p138 = scmp.ne.s32.totalorder %s127, %s130
      %p139 = scmp.eq.s32.totalorder %s21, 3
      %p140 = por %p138, %p139
      %p141 = scmp.ne.s32.totalorder %s130, %s131
      %p142 = scmp.eq.s32.totalorder %s21, 0
      %p143 = por %p141, %p142
      %p144 = scmp.ne.s32.totalorder %s130, %s131
      %p145 = scmp.eq.s32.totalorder %s22, 3
      %p146 = por %p144, %p145
      %p148 = scmp.ne.s32.totalorder %s131, %s147
      %p149 = scmp.eq.s32.totalorder %s22, 0
      %p150 = por %p148, %p149
      %p151 = scmp.le.s32.totalorder 1, %s16
      %p152 = scmp.lt.s32.totalorder %s16, 5
      %p153 = pnand %p151, %p152
      %p154 = pneg %p153
      // Predicated region
      $region9: #{tpu_custom_call.1} parent=5 // pred_check
        _
      $region10: #{tpu_custom_call.1} parent=5 // pred_check_branch
        %156 = sbr.rel (%p153) target = $region12
      $region11: #{tpu_custom_call.1} parent=5 // pred_region
        %s157 = ssub.s32 %s16, 1
        // Predicated region
        $region13: #{tpu_custom_call.1} parent=11 // pred_check
          %p158 = pneg %p61
        $region14: #{tpu_custom_call.1} parent=11 // pred_check_branch
          %160 = sbr.rel (%p158) target = $region16
        $region15: #{tpu_custom_call.1} parent=11 // pred_region
          %s161 = smul.u32 2, %s26
          %163 = vsyncadd [#allocation5], 0
          %s164 = smul.addr %s161, 4
          %s165 = scalar_lea.hbm %s0, %s164
          %s166 = sshll.u32 %s165, 4
          %s167 = int_to_ptr.hbm [resolvable:$true] %s166
          %s168 = sshll.u32 [#allocation4], 4
          %s169 = int_to_ptr.vmem [resolvable:$true] %s168
          %174 = dma.hbm_to_vmem [thread:$0]  %s167, 128, %s169, [#allocation5], 64, 64, 4
        $region16: #{tpu_custom_call.1} parent=11 // pred_fallthru
          _
      $region12: #{tpu_custom_call.1} parent=5 // pred_fallthru
        _
      %p175 = scmp.lt.s32.totalorder %s16, 4
      // Predicated region
      $region17: #{tpu_custom_call.1} parent=5 // pred_check
        %p176 = pneg %p175
      $region18: #{tpu_custom_call.1} parent=5 // pred_check_branch
        %178 = sbr.rel (%p176) target = $region20
      $region19: #{tpu_custom_call.1} parent=5 // pred_region
        // Predicated region
        $region21: #{tpu_custom_call.1} parent=19 // pred_check
          %p179 = pneg %p81
        $region22: #{tpu_custom_call.1} parent=19 // pred_check_branch
          %181 = sbr.rel (%p179) target = $region24
        $region23: #{tpu_custom_call.1} parent=19 // pred_region
          %s182 = sand.u32 %s16, 1
          %s183 = scalar_lea.sflag [#allocation8], %s182
          %s184 = sand.u32 %s71, 1
          %s185 = smul.addr %s184, 16
          %s186 = scalar_lea.vmem [#allocation7], %s185
          %188 = vsyncadd %s183, 0
          %s189 = smul.addr %s25, 4
          %s190 = scalar_lea.hbm %s1, %s189
          %s191 = sshll.u32 %s190, 4
          %s192 = int_to_ptr.hbm [resolvable:$true] %s191
          %s193 = sshll.u32 %s186, 4
          %s194 = int_to_ptr.vmem [resolvable:$true] %s193
          %199 = dma.hbm_to_vmem [thread:$0]  %s192, 256, %s194, %s183, 128, 64, 4
        $region24: #{tpu_custom_call.1} parent=19 // pred_fallthru
          _
        // Predicated region
        $region25: #{tpu_custom_call.1} parent=19 // pred_check
          %p200 = pneg %p107
        $region26: #{tpu_custom_call.1} parent=19 // pred_check_branch
          %202 = sbr.rel (%p200) target = $region28
        $region27: #{tpu_custom_call.1} parent=19 // pred_region
          %s203 = sand.u32 %s16, 1
          %s204 = scalar_lea.sflag [#allocation8], %s203
          %s205 = sand.u32 %s97, 1
          %s206 = scalar_lea.vmem [#allocation9], %s205
          %208 = vsyncadd %s204, 0
          %s209 = scalar_lea.hbm %s2, %s25
          %s211 = sshll.u32 %s209, 4
          %s212 = int_to_ptr.hbm [resolvable:$true] %s211
          %s213 = sshll.u32 %s206, 4
          %s214 = int_to_ptr.vmem [resolvable:$true] %s213
          %216 = dma.hbm_to_vmem [thread:$0]  %s212, 16, %s214, %s204
        $region28: #{tpu_custom_call.1} parent=19 // pred_fallthru
          _
      $region20: #{tpu_custom_call.1} parent=5 // pred_fallthru
        _
      %p217 = scmp.le.s32.totalorder 1, %s16
      %p218 = scmp.lt.s32.totalorder %s16, 5
      %p219 = pnand %p217, %p218
      %p220 = pneg %p219
      // Predicated region
      $region29: #{tpu_custom_call.1} parent=5 // pred_check
        _
      $region30: #{tpu_custom_call.1} parent=5 // pred_check_branch
        %222 = sbr.rel (%p219) target = $region32
      $region31: #{tpu_custom_call.1} parent=5 // pred_region
        %s223 = ssub.s32 %s16, 1
        // Predicated region
        $region33: #{tpu_custom_call.1} parent=31 // pred_check
          %p224 = pneg %p61
        $region34: #{tpu_custom_call.1} parent=31 // pred_check_branch
          %226 = sbr.rel (%p224) target = $region36
        $region35: #{tpu_custom_call.1} parent=31 // pred_region
          %228 = dma.done [#allocation5], 128
        $region36: #{tpu_custom_call.1} parent=31 // pred_fallthru
          _
        %s229 = sand.u32 %s21, 1
        %s230 = scalar_lea.sflag [#allocation8], %s229
        %s231 = sand.u32 %s74, 1
        %s232 = smul.addr %s231, 16
        %s233 = scalar_lea.vmem [#allocation7], %s232
        // Predicated region
        $region37: #{tpu_custom_call.1} parent=31 // pred_check
          %p234 = pneg %p87
        $region38: #{tpu_custom_call.1} parent=31 // pred_check_branch
          %236 = sbr.rel (%p234) target = $region40
        $region39: #{tpu_custom_call.1} parent=31 // pred_region
          %238 = dma.done %s230, 256
        $region40: #{tpu_custom_call.1} parent=31 // pred_fallthru
          _
        %s239 = sand.u32 %s21, 1
        %s240 = scalar_lea.sflag [#allocation8], %s239
        %s241 = sand.u32 %s100, 1
        %s242 = scalar_lea.vmem [#allocation9], %s241
        // Predicated region
        $region41: #{tpu_custom_call.1} parent=31 // pred_check
          %p243 = pneg %p113
        $region42: #{tpu_custom_call.1} parent=31 // pred_check_branch
          %245 = sbr.rel (%p243) target = $region44
        $region43: #{tpu_custom_call.1} parent=31 // pred_region
          %247 = dma.done %s240, 16
        $region44: #{tpu_custom_call.1} parent=31 // pred_fallthru
          _
        %p248 = pneg %p61
        %p249 = pneg %p58
        %s250 = sand.u32 %s21, 1
        %s251 = scalar_lea.sflag [#allocation8], %s250
        %s252 = sand.u32 %s74, 1
        %s253 = smul.addr %s252, 16
        %s254 = scalar_lea.vmem [#allocation7], %s253
        %p255 = pneg %p87
        %p256 = pneg %p84
        %s257 = sand.u32 %s21, 1
        %s258 = scalar_lea.sflag [#allocation8], %s257
        %s259 = sand.u32 %s100, 1
        %s260 = scalar_lea.vmem [#allocation9], %s259
        %p261 = pneg %p113
        %p262 = pneg %p110
        %p263 = pneg %p143
        %p264 = pneg %p140
        %s265 = sand.u32 %s130, 1
        %s266 = scalar_lea.sflag [#allocation6], %s265
        %s267 = sand.u32 %s130, 1
        %s268 = smul.addr %s267, 8
        %s269 = scalar_lea.vmem [#allocation10], %s268
        %s270 = smul.u32 2, %s26
        %s271 = smul.u32 %s28, %s27
        %s272 = smul.u32 2, %s26
        %v274 = vld [vmem:[#allocation4] sm:$0xf]
        %v275 = vld [vmem:[#allocation4 + $0x4] sm:$0xf]
        %v276 = vld [vmem:[%s233] sm:$0xf]
        %v277 = vld [vmem:[%s233 + $0x4] sm:$0xf]
        %v278 = vld [vmem:[%s233 + $0x8] sm:$0xf]
        %v279 = vld [vmem:[%s233 + $0xc] sm:$0xf]
        %v280 = vld [vmem:[%s242] sm:$0x1]
        %v282 = vperm.slane %v280, 0
        %v286 = vunpack.c.l.b16 %v274
        %v287 = vunpack.c.l.b16 %v275
        %v288 = vpack.c.b16 %v287, %v286
        %v293 = vunpack.c.l.b16 %v276
        %v294 = vunpack.c.l.b16 %v277
        %v295 = vunpack.c.l.b16 %v278
        %v296 = vunpack.c.l.b16 %v279
        %v297 = vpack.c.b16 %v294, %v293
        %v298 = vpack.c.b16 %v296, %v295
        %vm301 = vcmask 261120
        %v303 = vsel %vm301, %v288, 0
        %305 = vmatpush.bf16.msra.mxu0 0
        %306 = vmatpush.bf16.msra.mxu0 0
        %307 = vmatpush.bf16.msra.mxu0 0
        %308 = vmatpush.bf16.msra.mxu0 0
        %309 = vmatpush.bf16.msra.mxu0 0
        %310 = vmatpush.bf16.msra.mxu0 0
        %311 = vmatpush.bf16.msra.mxu0 %v298
        %312 = vmatpush.bf16.msra.mxu0 %v297
        %313 = vmatmul.bf16.gmra.mxu0 %v303
        %v314 = vpop.f32.mrf.mxu0
        %v315 = vadd.f32 %v282, %v314
        %v316 = vpop.f32.mrf.mxu0
        %v317 = vadd.f32 %v282, %v316
        %318 = vdwg.mxu0
        %p319 = scmp.eq.s32.totalorder %s27, 0
        // Predicated region
        $region45: #{tpu_custom_call.1} parent=31 // pred_check
          %p320 = pneg %p319
        $region46: #{tpu_custom_call.1} parent=31 // pred_check_branch
          %322 = sbr.rel (%p320) target = $region48
        $region47: #{tpu_custom_call.1} parent=31 // pred_region
          %p323 = scmp.eq.s32.totalorder %s28, 0
          // Predicated region
          $region49: #{tpu_custom_call.1} parent=47 // pred_check
            %p324 = pneg %p323
          $region50: #{tpu_custom_call.1} parent=47 // pred_check_branch
            %326 = sbr.rel (%p324) target = $region52
          $region51: #{tpu_custom_call.1} parent=47 // pred_region
            %vm327 = vcmask 7168
            %328 = vst.msk [vmem:[#allocation2] sm:$0xff] %vm327, -inf
            %329 = vst.msk [vmem:[#allocation2 + $0x8] sm:$0xff] %vm327, -inf
            %330 = vst.msk [vmem:[#allocation3] sm:$0xff] %vm327, 0.0
            %331 = vst.msk [vmem:[#allocation3 + $0x8] sm:$0xff] %vm327, 0.0
          $region52: #{tpu_custom_call.1} parent=47 // pred_fallthru
            _
          %v332 = vld [vmem:[#allocation2] sm:$0xff]
          %v333 = vld [vmem:[#allocation2 + $0x8] sm:$0xff]
          %334 = vmax.xlane.f32.xlu0 %v315
          %v335 = vpop.xlane.xlu0 %334
          %336 = vmax.xlane.f32.xlu0 %v317
          %v337 = vpop.xlane.xlu0 %336
          %v338 = vmax.f32 %v332, %v335
          %v339 = vmax.f32 %v333, %v337
          %v340 = vld [vmem:[#allocation3] sm:$0xff]
          %v341 = vld [vmem:[#allocation3 + $0x8] sm:$0xff]
          %v342 = vsub.f32 %v332, %v338
          %v343 = vsub.f32 %v333, %v339
          %v344 = vmul.f32 %v342, 1.442695
          %v345 = vpow.pop %v344
          %v346 = vmul.f32 %v343, 1.442695
          %v347 = vpow.pop %v346
          %v348 = vmul.f32 %v340, %v345
          %v349 = vmul.f32 %v341, %v347
          %351 = vset.pattern.permute.xlu0 0
          %352 = vperm.xlu0 %351, %v338
          %v353 = vpop.permute.xlu0 %352
          %356 = vset.pattern.permute.xlu0 0
          %357 = vperm.xlu0 %356, %v339
          %v358 = vpop.permute.xlu0 %357
          %v360 = vsub.f32 %v315, %v353
          %v361 = vsub.f32 %v317, %v358
          %v362 = vmul.f32 %v360, 1.442695
          %v363 = vpow.pop %v362
          %v364 = vmul.f32 %v361, 1.442695
          %v365 = vpow.pop %v364
          %366 = vadd.xlane.f32.xlu0 %v363
          %v367 = vpop.xlane.xlu0 %366
          %368 = vadd.xlane.f32.xlu0 %v365
          %v369 = vpop.xlane.xlu0 %368
          %v370 = vadd.f32 %v348, %v367
          %v371 = vadd.f32 %v349, %v369
          %vm372 = vcmask 7168
          %373 = vst.msk [vmem:[#allocation3] sm:$0xff] %vm372, %v370
          %374 = vst.msk [vmem:[#allocation3 + $0x8] sm:$0xff] %vm372, %v371
          %375 = vst.msk [vmem:[#allocation2] sm:$0xff] %vm372, %v338
          %376 = vst.msk [vmem:[#allocation2 + $0x8] sm:$0xff] %vm372, %v339
        $region48: #{tpu_custom_call.1} parent=31 // pred_fallthru
          _
        %p377 = scmp.eq.s32.totalorder %s27, 1
        // Predicated region
        $region53: #{tpu_custom_call.1} parent=31 // pred_check
          %p378 = pneg %p377
        $region54: #{tpu_custom_call.1} parent=31 // pred_check_branch
          %380 = sbr.rel (%p378) target = $region56
        $region55: #{tpu_custom_call.1} parent=31 // pred_region
          %v381 = vld [vmem:[#allocation2] sm:$0xff]
          %v382 = vld [vmem:[#allocation2 + $0x8] sm:$0xff]
          %v383 = vld [vmem:[#allocation3] sm:$0xff]
          %v384 = vld [vmem:[#allocation3 + $0x8] sm:$0xff]
          %v385 = vlog2.pop %v383
          %v386 = vmul.f32 %v385, 0.6931472
          %v387 = vlog2.pop %v384
          %v388 = vmul.f32 %v387, 0.6931472
          %v389 = vadd.f32 %v381, %v386
          %v390 = vadd.f32 %v382, %v388
          %392 = vset.pattern.permute.xlu0 0
          %393 = vperm.xlu0 %392, %v389
          %v394 = vpop.permute.xlu0 %393
          %397 = vset.pattern.permute.xlu0 0
          %398 = vperm.xlu0 %397, %v390
          %v399 = vpop.permute.xlu0 %398
          %v401 = vsub.f32 %v315, %v394
          %v402 = vsub.f32 %v317, %v399
          %v403 = vpack.c.bf16 %v401, %v401
          %v404 = vpack.c.bf16 %v402, %v402
          %405 = vst [vmem:[%s269] sm:$0xf] %v403
          %406 = vst [vmem:[%s269 + $0x4] sm:$0xf] %v404
        $region56: #{tpu_custom_call.1} parent=31 // pred_fallthru
          _
        %s407 = sand.u32 %s130, 1
        %s408 = scalar_lea.sflag [#allocation6], %s407
        %s409 = sand.u32 %s130, 1
        %s410 = smul.addr %s409, 8
        %s411 = scalar_lea.vmem [#allocation10], %s410
        // Predicated region
        $region57: #{tpu_custom_call.1} parent=31 // pred_check
          %p412 = pneg %p140
        $region58: #{tpu_custom_call.1} parent=31 // pred_check_branch
          %414 = sbr.rel (%p412) target = $region60
        $region59: #{tpu_custom_call.1} parent=31 // pred_region
          %s415 = smul.u32 %s28, %s27
          %s416 = smul.u32 2, %s26
          %418 = vsyncadd %s408, 0
          %s419 = smul.addr %s416, 2
          %s420 = sadd.s32 %s415, %s419
          %s421 = smul.addr %s420, 4
          %s422 = scalar_lea.hbm %s3, %s421
          %s423 = sshll.u32 %s411, 4
          %s424 = int_to_ptr.vmem [resolvable:$true] %s423
          %s425 = sshll.u32 %s422, 4
          %s426 = int_to_ptr.hbm [resolvable:$true] %s425
          %431 = dma.vmem_to_hbm [thread:$0]  %s424, 128, %s426, %s408, 64, 128, 4
        $region60: #{tpu_custom_call.1} parent=31 // pred_fallthru
          _
      $region32: #{tpu_custom_call.1} parent=5 // pred_fallthru
        _
      %p432 = scmp.le.s32.totalorder 2, %s16
      // Predicated region
      $region61: #{tpu_custom_call.1} parent=5 // pred_check
        %p433 = pneg %p432
      $region62: #{tpu_custom_call.1} parent=5 // pred_check_branch
        %435 = sbr.rel (%p433) target = $region64
      $region63: #{tpu_custom_call.1} parent=5 // pred_region
        %s436 = ssub.s32 %s16, 2
        // Predicated region
        $region65: #{tpu_custom_call.1} parent=63 // pred_check
          %p437 = pneg %p146
        $region66: #{tpu_custom_call.1} parent=63 // pred_check_branch
          %439 = sbr.rel (%p437) target = $region68
        $region67: #{tpu_custom_call.1} parent=63 // pred_region
          %s440 = sand.u32 %s131, 1
          %s441 = scalar_lea.sflag [#allocation6], %s440
          %s442 = sand.u32 %s131, 1
          %s443 = smul.addr %s442, 8
          %s444 = scalar_lea.vmem [#allocation10], %s443
          %446 = dma.done %s441, 128
        $region68: #{tpu_custom_call.1} parent=63 // pred_fallthru
          _
      $region64: #{tpu_custom_call.1} parent=5 // pred_fallthru
        _
    $region6: #{tpu_custom_call.1} parent=1 // loop_footer
      %s20 = sadd.s32 1, %s16
    $region7: #{tpu_custom_call.1} parent=1 // loop_footer_branch
      %15 = sbr.rel target = $region3
    $region8: #{tpu_custom_call.1} parent=1 // loop_exit
      _
    %447 = vsyncpa [#allocation5], 1
    %s448 = scalar_lea.sflag [#allocation5], 1
    %449 = vsyncpa %s448, 1
    %450 = vsyncpa [#allocation8], 1
    %s451 = scalar_lea.sflag [#allocation8], 1
    %452 = vsyncpa %s451, 1
    %453 = vsyncpa [#allocation6], 1
    %s454 = scalar_lea.sflag [#allocation6], 1
    %455 = vsyncpa %s454, 1

</llo_original>
